<compile_context>
chip_gen: v7x
topology: tpu7x:2x2x1
jax: 0.10.0
libtpu: 0.0.40
codegen_flags: <defaults>
</compile_context>

<pallas_src>
import functools

import jax
import jax.numpy as jnp
from jax import lax
from jax.experimental import pallas as pl
from jax.experimental.pallas import tpu as pltpu


def _round_up(x, m):
    return ((x + m - 1) // m) * m


def _cdiv(a, b):
    return -(-a // b)


def _make_kernel(taps, tm):
    """Fused conv (BN folded) + ReLU kernel body.

    taps: static list of (phase_r, lane_off) per kernel tap (i, j).  Tap t's
    weight slice is w_ref[t]; its input slice is the contiguous window
    x_ref[phase_r, :, lane_off : lane_off + tm] of the space-to-depth input.
    """
    def kernel(w_ref, x_ref, scale_ref, shift_ref, o_ref):
        # w_ref:     (kh*kw, Cp, Cin_p)       bf16  resident across the grid
        # x_ref:     (s*s, Cin_p, tm + halo)  bf16  per-(n, m-tile) input window
        # scale_ref: (Cp, 1) f32   folded BN scale = gamma / sqrt(var + eps)
        # shift_ref: (Cp, 1) f32   folded shift    = (bias - mean)*scale + beta
        # o_ref:     (Cp, tm) f32  lane-dense output tile
        acc = None
        for t, (r, off) in enumerate(taps):           # static unrolled, kh*kw iters
            x_tap = x_ref[r, :, off:off + tm]          # (Cin_p, tm), static slice
            contrib = jnp.dot(w_ref[t], x_tap,
                              preferred_element_type=jnp.float32)
            acc = contrib if acc is None else acc + contrib
        y = acc * scale_ref[...] + shift_ref[...]
        o_ref[...] = jnp.maximum(y, 0.0).astype(o_ref.dtype)
    return kernel


@functools.partial(
    jax.jit, static_argnames=("stride", "padding", "dilation", "compute_dtype"))
def downsample_module_forward(x, conv_w, conv_b, bn_gamma, bn_beta,
                              bn_mean, bn_var, *, stride=1, padding=0,
                              dilation=1, eps=1e-5,
                              compute_dtype=jnp.bfloat16):
    """relu(batchnorm(conv2d(x)))  — forward pass of DownsampleModule.

    x:       (N, Cin, H, W)        float32, NCHW
    conv_w:  (Cout, Cin, kh, kw)
    conv_b, bn_*: (Cout,)
    returns: (N, Cout, Hout, Wout) float32
    """
    N, Cin, H, W = x.shape
    Cout, _, kh, kw = conv_w.shape
    s, d, p = stride, dilation, padding

    Hout = (H + 2 * p - d * (kh - 1) - 1) // s + 1
    Wout = (W + 2 * p - d * (kw - 1) - 1) // s + 1

    # --- space-to-depth rearrangement (raw-input sized, single XLA pass) -----
    # xs[n, ri*s+rj, ci, hh*Ws+ww] = x_padded[n, ci, hh*s+ri, ww*s+rj]
    Hs, Ws = _cdiv(H + 2 * p, s), _cdiv(W + 2 * p, s)
    Hpp, Wpp = Hs * s, Ws * s
    xp = jnp.pad(x, ((0, 0), (0, 0), (p, Hpp - H - p), (p, Wpp - W - p)))
    xs = xp.reshape(N, Cin, Hs, s, Ws, s).transpose(0, 3, 5, 1, 2, 4)
    xs = xs.reshape(N, s * s, Cin, Hs * Ws)

    # Per-tap (i, j): phase r = ri*s+rj and flat lane offset off = qi*Ws+qj,
    # where i*d = qi*s + ri, j*d = qj*s + rj.  Then for output column
    # m = ho*Ws + wo the tap value is xs[n, r, ci, off + m]  (unit stride).
    taps = []
    for i in range(kh):
        for j in range(kw):
            qi, ri = (i * d) // s, (i * d) % s
            qj, rj = (j * d) // s, (j * d) % s
            taps.append((ri * s + rj, qi * Ws + qj))
    off_max = max(off for _, off in taps)
    halo = _round_up(off_max, 128) if off_max > 0 else 0

    # Flattened output columns (includes Ws - Wout garbage columns per row,
    # sliced off in the wrapper; avoids any in-kernel reshape/transpose).
    Mv = Hout * Ws
    Mp128 = _round_up(Mv, 128)

    Cp = _round_up(Cout, 8)          # f32 sublane tile only (halves Cout=8 writes)
    Cin_p = _round_up(Cin, 8)        # MXU contraction dim; no-op for real nets

    # --- M tiling: big lane-dense tiles, VMEM-budgeted, balanced padding -----
    bpe = jnp.dtype(compute_dtype).itemsize
    per_lane = (2 * (s * s * Cin_p * bpe + Cp * 4)   # dbl-buffered in/out tiles
                + Cp * 4 + 2 * Cin_p * bpe)          # f32 acc + per-tap temps
    cap = max(128, min(4096, ((24 << 20) // per_lane) // 128 * 128))
    nm = _cdiv(Mp128, cap)
    if N == 1 and nm == 1 and Mp128 >= 256:
        nm = 2                                        # keep both v7x TCs busy
    tm = _round_up(_cdiv(Mp128, nm), 128)
    Mp = nm * tm

    # Pad the flat axis so every tile window [mi*tm, mi*tm + tm + halo) exists,
    # pad Cin, then build overlapping (halo-duplicated) tile windows so ALL
    # in-kernel slices are static.
    flat_needed = Mp + halo
    xs = jnp.pad(xs, ((0, 0), (0, 0), (0, Cin_p - Cin),
                      (0, max(0, flat_needed - Hs * Ws))))
    idx = jnp.arange(nm)[:, None] * tm + jnp.arange(tm + halo)[None, :]
    xs_t = xs[:, :, :, idx]                          # (N, s*s, Cin_p, nm, tm+halo)
    xs_t = xs_t.transpose(0, 3, 1, 2, 4)             # (N, nm, s*s, Cin_p, tm+halo)
    xs_t = xs_t.astype(compute_dtype)

    # Per-tap weights (kh*kw, Cp, Cin_p) + folded BN affine.
    w_t = conv_w.transpose(2, 3, 0, 1).reshape(kh * kw, Cout, Cin)
    w_t = jnp.pad(w_t, ((0, 0), (0, Cp - Cout), (0, Cin_p - Cin)))
    w_t = w_t.astype(compute_dtype)
    scale = bn_gamma / jnp.sqrt(bn_var + eps)                 # (Cout,)
    shift = (conv_b - bn_mean) * scale + bn_beta              # (Cout,)
    scale_p = jnp.pad(scale, (0, Cp - Cout)).reshape(Cp, 1).astype(jnp.float32)
    shift_p = jnp.pad(shift, (0, Cp - Cout)).reshape(Cp, 1).astype(jnp.float32)

    kernel = _make_kernel(taps, tm)

    # Right-sized VMEM limit (working set + margin), well under v7x's 64 MiB.
    x_tile_b = s * s * Cin_p * (tm + halo) * bpe
    o_tile_b = Cp * tm * 4
    w_b = kh * kw * Cp * Cin_p * bpe
    work_set = 2 * (x_tile_b + o_tile_b) + o_tile_b + 2 * (w_b + 2 * Cp * 4)
    vmem_limit = min(int(work_set + (8 << 20)), 48 << 20)

    cost = pl.CostEstimate(
        flops=2 * N * Cout * Cin * kh * kw * Hout * Wout,
        transcendentals=0,
        bytes_accessed=int(xs_t.size * bpe + w_b + N * Cp * Mp * 4 + 4 * Cp * 4))

    out = pl.pallas_call(
        kernel,
        out_shape=jax.ShapeDtypeStruct((N, Cp, Mp), jnp.float32),
        grid_spec=pltpu.PrefetchScalarGridSpec(
            num_scalar_prefetch=0,
            grid=(N, nm),
            in_specs=[
                # Constant block index -> fetched once, resident across grid.
                pl.BlockSpec((kh * kw, Cp, Cin_p), lambda n, m: (0, 0, 0)),
                # Per-(n, m-tile) input window with static halo.
                pl.BlockSpec((None, None, s * s, Cin_p, tm + halo),
                             lambda n, m: (n, m, 0, 0, 0)),
                pl.BlockSpec((Cp, 1), lambda n, m: (0, 0)),   # BN scale
                pl.BlockSpec((Cp, 1), lambda n, m: (0, 0)),   # BN shift
            ],
            out_specs=pl.BlockSpec((None, Cp, tm), lambda n, m: (n, 0, m)),
        ),
        compiler_params=pltpu.CompilerParams(
            dimension_semantics=("parallel", "parallel"),
            vmem_limit_bytes=vmem_limit),
        cost_estimate=cost,
    )(w_t, xs_t, scale_p, shift_p)

    # Slice off channel / lane padding and the per-row garbage columns.
    # Already channel-major -> NO transpose pass, just slice + free reshape.
    out = out[:, :Cout, :Mv].reshape(N, Cout, Hout, Ws)[..., :Wout]
    return out


if __name__ == "__main__":
    # Small shapes consistent with DownsampleModule:
    # inplanes=4, outplanes=8, kernel_size=3, stride=2, padding=1, bias=True
    N, Cin, H, W = 2, 4, 16, 16
    Cout, kh, kw = 8, 3, 3
    stride, padding, dilation = 2, 1, 1

    key = jax.random.PRNGKey(0)
    kx, kw_, kb, kg, kbt, km, kv = jax.random.split(key, 7)

    x = jax.random.normal(kx, (N, Cin, H, W), dtype=jnp.float32)
    conv_w = 0.1 * jax.random.normal(kw_, (Cout, Cin, kh, kw), dtype=jnp.float32)
    conv_b = 0.1 * jax.random.normal(kb, (Cout,), dtype=jnp.float32)
    bn_gamma = 1.0 + 0.1 * jax.random.normal(kg, (Cout,), dtype=jnp.float32)
    bn_beta = 0.1 * jax.random.normal(kbt, (Cout,), dtype=jnp.float32)
    bn_mean = 0.1 * jax.random.normal(km, (Cout,), dtype=jnp.float32)
    bn_var = jnp.abs(1.0 + 0.1 * jax.random.normal(kv, (Cout,), dtype=jnp.float32))

    out = downsample_module_forward(
        x, conv_w, conv_b, bn_gamma, bn_beta, bn_mean, bn_var,
        stride=stride, padding=padding, dilation=dilation)
    out = jax.block_until_ready(out)

    # Pure-JAX reference (module semantics, eval-mode BN).
    def ref_fwd(x_in, w_in):
        c = lax.conv_general_dilated(
            x_in, w_in, window_strides=(stride, stride),
            padding=((padding, padding), (padding, padding)),
            rhs_dilation=(dilation, dilation),
            dimension_numbers=("NCHW", "OIHW", "NCHW"),
            precision=lax.Precision.HIGHEST)
        c = c + conv_b.reshape(1, Cout, 1, 1)
        y = (c - bn_mean.reshape(1, Cout, 1, 1)) / jnp.sqrt(
            bn_var.reshape(1, Cout, 1, 1) + 1e-5)
        y = y * bn_gamma.reshape(1, Cout, 1, 1) + bn_beta.reshape(1, Cout, 1, 1)
        return jnp.maximum(y, 0.0)

    ref_f32 = ref_fwd(x, conv_w)
    # Reference on bf16-quantized inputs: isolates accumulation-order diffs only.
    ref_bf16 = ref_fwd(x.astype(jnp.bfloat16).astype(jnp.float32),
                       conv_w.astype(jnp.bfloat16).astype(jnp.float32))

    assert out.shape == (N, Cout, H // stride, W // stride), out.shape
    assert jnp.allclose(out, ref_bf16, atol=2e-3, rtol=2e-3), float(
        jnp.max(jnp.abs(out - ref_bf16)))
    # Loose check against true f32 semantics (kernel uses bf16 MXU operands).
    assert jnp.allclose(out, ref_f32, atol=5e-2, rtol=5e-2), float(
        jnp.max(jnp.abs(out - ref_f32)))

    print("KERNEL_OK")
</pallas_src>

<mosaic_0001>
module attributes {stable_mosaic.version = 11 : i64} {
  func.func @kernel(%arg0: i32, %arg1: i32, %arg2: memref<9x8x8xbf16, #tpu.memory_space<vmem>>, %arg3: memref<1x1x4x8x256xbf16, #tpu.memory_space<vmem>>, %arg4: memref<8x1xf32, #tpu.memory_space<vmem>>, %arg5: memref<8x1xf32, #tpu.memory_space<vmem>>, %arg6: memref<1x8x128xf32, #tpu.memory_space<vmem>>) attributes {dimension_semantics = [#tpu.dimension_semantics<parallel>, #tpu.dimension_semantics<parallel>], iteration_bounds = array<i64: 2, 1>, scalar_prefetch = 0 : i64, scratch_operands = 0 : i64, tpu.core_type = #tpu.core_type<tc>, window_params = [{pipeline_mode = #tpu.pipeline_mode<synchronous>, transform_indices = @transform_0, window_bounds = array<i64: 9, 8, 8>}, {transform_indices = @transform_1, window_bounds = array<i64: 1, 1, 4, 8, 256>}, {pipeline_mode = #tpu.pipeline_mode<synchronous>, transform_indices = @transform_2, window_bounds = array<i64: 8, 1>}, {pipeline_mode = #tpu.pipeline_mode<synchronous>, transform_indices = @transform_3, window_bounds = array<i64: 8, 1>}, {transform_indices = @transform_4, window_bounds = array<i64: 1, 8, 128>}]} {
    %c0 = arith.constant 0 : index
    %c0_0 = arith.constant 0 : index
    %c0_1 = arith.constant 0 : index
    %c0_2 = arith.constant 0 : index
    %c0_3 = arith.constant 0 : index
    %0 = vector.load %arg3[%c0, %c0_0, %c0_1, %c0_2, %c0_3] : memref<1x1x4x8x256xbf16, #tpu.memory_space<vmem>>, vector<1x1x1x8x128xbf16>
    %1 = vector.shape_cast %0 : vector<1x1x1x8x128xbf16> to vector<8x128xbf16>
    %c0_4 = arith.constant 0 : index
    %c0_5 = arith.constant 0 : index
    %c0_6 = arith.constant 0 : index
    %2 = vector.load %arg2[%c0_4, %c0_5, %c0_6] : memref<9x8x8xbf16, #tpu.memory_space<vmem>>, vector<1x8x8xbf16>
    %3 = vector.shape_cast %2 : vector<1x8x8xbf16> to vector<8x8xbf16>
    %cst = arith.constant dense<0.000000e+00> : vector<8x128xf32>
    %4 = tpu.matmul %3, %1, %cst {dimension_numbers = #tpu.dot_dimension_numbers<[1], [0], [0], [1], [0, 0, 1, 1], [], []>} : vector<8x8xbf16>, vector<8x128xbf16>, vector<8x128xf32> -> vector<8x128xf32>
    %c0_7 = arith.constant 0 : index
    %c0_8 = arith.constant 0 : index
    %c1 = arith.constant 1 : index
    %c0_9 = arith.constant 0 : index
    %c0_10 = arith.constant 0 : index
    %5 = vector.load %arg3[%c0_7, %c0_8, %c1, %c0_9, %c0_10] : memref<1x1x4x8x256xbf16, #tpu.memory_space<vmem>>, vector<1x1x1x8x128xbf16>
    %6 = vector.shape_cast %5 : vector<1x1x1x8x128xbf16> to vector<8x128xbf16>
    %c1_11 = arith.constant 1 : index
    %c0_12 = arith.constant 0 : index
    %c0_13 = arith.constant 0 : index
    %7 = vector.load %arg2[%c1_11, %c0_12, %c0_13] : memref<9x8x8xbf16, #tpu.memory_space<vmem>>, vector<1x8x8xbf16>
    %8 = vector.shape_cast %7 : vector<1x8x8xbf16> to vector<8x8xbf16>
    %cst_14 = arith.constant dense<0.000000e+00> : vector<8x128xf32>
    %9 = tpu.matmul %8, %6, %cst_14 {dimension_numbers = #tpu.dot_dimension_numbers<[1], [0], [0], [1], [0, 0, 1, 1], [], []>} : vector<8x8xbf16>, vector<8x128xbf16>, vector<8x128xf32> -> vector<8x128xf32>
    %10 = arith.addf %4, %9 : vector<8x128xf32>
    %c0_15 = arith.constant 0 : index
    %c0_16 = arith.constant 0 : index
    %c0_17 = arith.constant 0 : index
    %c0_18 = arith.constant 0 : index
    %c1_19 = arith.constant 1 : index
    %11 = vector.load %arg3[%c0_15, %c0_16, %c0_17, %c0_18, %c1_19] : memref<1x1x4x8x256xbf16, #tpu.memory_space<vmem>>, vector<1x1x1x8x128xbf16>
    %12 = vector.shape_cast %11 : vector<1x1x1x8x128xbf16> to vector<8x128xbf16>
    %c2 = arith.constant 2 : index
    %c0_20 = arith.constant 0 : index
    %c0_21 = arith.constant 0 : index
    %13 = vector.load %arg2[%c2, %c0_20, %c0_21] : memref<9x8x8xbf16, #tpu.memory_space<vmem>>, vector<1x8x8xbf16>
    %14 = vector.shape_cast %13 : vector<1x8x8xbf16> to vector<8x8xbf16>
    %cst_22 = arith.constant dense<0.000000e+00> : vector<8x128xf32>
    %15 = tpu.matmul %14, %12, %cst_22 {dimension_numbers = #tpu.dot_dimension_numbers<[1], [0], [0], [1], [0, 0, 1, 1], [], []>} : vector<8x8xbf16>, vector<8x128xbf16>, vector<8x128xf32> -> vector<8x128xf32>
    %16 = arith.addf %10, %15 : vector<8x128xf32>
    %c0_23 = arith.constant 0 : index
    %c0_24 = arith.constant 0 : index
    %c2_25 = arith.constant 2 : index
    %c0_26 = arith.constant 0 : index
    %c0_27 = arith.constant 0 : index
    %17 = vector.load %arg3[%c0_23, %c0_24, %c2_25, %c0_26, %c0_27] : memref<1x1x4x8x256xbf16, #tpu.memory_space<vmem>>, vector<1x1x1x8x128xbf16>
    %18 = vector.shape_cast %17 : vector<1x1x1x8x128xbf16> to vector<8x128xbf16>
    %c3 = arith.constant 3 : index
    %c0_28 = arith.constant 0 : index
    %c0_29 = arith.constant 0 : index
    %19 = vector.load %arg2[%c3, %c0_28, %c0_29] : memref<9x8x8xbf16, #tpu.memory_space<vmem>>, vector<1x8x8xbf16>
    %20 = vector.shape_cast %19 : vector<1x8x8xbf16> to vector<8x8xbf16>
    %cst_30 = arith.constant dense<0.000000e+00> : vector<8x128xf32>
    %21 = tpu.matmul %20, %18, %cst_30 {dimension_numbers = #tpu.dot_dimension_numbers<[1], [0], [0], [1], [0, 0, 1, 1], [], []>} : vector<8x8xbf16>, vector<8x128xbf16>, vector<8x128xf32> -> vector<8x128xf32>
    %22 = arith.addf %16, %21 : vector<8x128xf32>
    %c0_31 = arith.constant 0 : index
    %c0_32 = arith.constant 0 : index
    %c3_33 = arith.constant 3 : index
    %c0_34 = arith.constant 0 : index
    %c0_35 = arith.constant 0 : index
    %23 = vector.load %arg3[%c0_31, %c0_32, %c3_33, %c0_34, %c0_35] : memref<1x1x4x8x256xbf16, #tpu.memory_space<vmem>>, vector<1x1x1x8x128xbf16>
    %24 = vector.shape_cast %23 : vector<1x1x1x8x128xbf16> to vector<8x128xbf16>
    %c4 = arith.constant 4 : index
    %c0_36 = arith.constant 0 : index
    %c0_37 = arith.constant 0 : index
    %25 = vector.load %arg2[%c4, %c0_36, %c0_37] : memref<9x8x8xbf16, #tpu.memory_space<vmem>>, vector<1x8x8xbf16>
    %26 = vector.shape_cast %25 : vector<1x8x8xbf16> to vector<8x8xbf16>
    %cst_38 = arith.constant dense<0.000000e+00> : vector<8x128xf32>
    %27 = tpu.matmul %26, %24, %cst_38 {dimension_numbers = #tpu.dot_dimension_numbers<[1], [0], [0], [1], [0, 0, 1, 1], [], []>} : vector<8x8xbf16>, vector<8x128xbf16>, vector<8x128xf32> -> vector<8x128xf32>
    %28 = arith.addf %22, %27 : vector<8x128xf32>
    %c0_39 = arith.constant 0 : index
    %c0_40 = arith.constant 0 : index
    %c2_41 = arith.constant 2 : index
    %c0_42 = arith.constant 0 : index
    %c1_43 = arith.constant 1 : index
    %29 = vector.load %arg3[%c0_39, %c0_40, %c2_41, %c0_42, %c1_43] : memref<1x1x4x8x256xbf16, #tpu.memory_space<vmem>>, vector<1x1x1x8x128xbf16>
    %30 = vector.shape_cast %29 : vector<1x1x1x8x128xbf16> to vector<8x128xbf16>
    %c5 = arith.constant 5 : index
    %c0_44 = arith.constant 0 : index
    %c0_45 = arith.constant 0 : index
    %31 = vector.load %arg2[%c5, %c0_44, %c0_45] : memref<9x8x8xbf16, #tpu.memory_space<vmem>>, vector<1x8x8xbf16>
    %32 = vector.shape_cast %31 : vector<1x8x8xbf16> to vector<8x8xbf16>
    %cst_46 = arith.constant dense<0.000000e+00> : vector<8x128xf32>
    %33 = tpu.matmul %32, %30, %cst_46 {dimension_numbers = #tpu.dot_dimension_numbers<[1], [0], [0], [1], [0, 0, 1, 1], [], []>} : vector<8x8xbf16>, vector<8x128xbf16>, vector<8x128xf32> -> vector<8x128xf32>
    %34 = arith.addf %28, %33 : vector<8x128xf32>
    %c0_47 = arith.constant 0 : index
    %c0_48 = arith.constant 0 : index
    %c0_49 = arith.constant 0 : index
    %c0_50 = arith.constant 0 : index
    %c9 = arith.constant 9 : index
    %35 = vector.load %arg3[%c0_47, %c0_48, %c0_49, %c0_50, %c9] : memref<1x1x4x8x256xbf16, #tpu.memory_space<vmem>>, vector<1x1x1x8x128xbf16>
    %36 = vector.shape_cast %35 : vector<1x1x1x8x128xbf16> to vector<8x128xbf16>
    %c6 = arith.constant 6 : index
    %c0_51 = arith.constant 0 : index
    %c0_52 = arith.constant 0 : index
    %37 = vector.load %arg2[%c6, %c0_51, %c0_52] : memref<9x8x8xbf16, #tpu.memory_space<vmem>>, vector<1x8x8xbf16>
    %38 = vector.shape_cast %37 : vector<1x8x8xbf16> to vector<8x8xbf16>
    %cst_53 = arith.constant dense<0.000000e+00> : vector<8x128xf32>
    %39 = tpu.matmul %38, %36, %cst_53 {dimension_numbers = #tpu.dot_dimension_numbers<[1], [0], [0], [1], [0, 0, 1, 1], [], []>} : vector<8x8xbf16>, vector<8x128xbf16>, vector<8x128xf32> -> vector<8x128xf32>
    %40 = arith.addf %34, %39 : vector<8x128xf32>
    %c0_54 = arith.constant 0 : index
    %c0_55 = arith.constant 0 : index
    %c1_56 = arith.constant 1 : index
    %c0_57 = arith.constant 0 : index
    %c9_58 = arith.constant 9 : index
    %41 = vector.load %arg3[%c0_54, %c0_55, %c1_56, %c0_57, %c9_58] : memref<1x1x4x8x256xbf16, #tpu.memory_space<vmem>>, vector<1x1x1x8x128xbf16>
    %42 = vector.shape_cast %41 : vector<1x1x1x8x128xbf16> to vector<8x128xbf16>
    %c7 = arith.constant 7 : index
    %c0_59 = arith.constant 0 : index
    %c0_60 = arith.constant 0 : index
    %43 = vector.load %arg2[%c7, %c0_59, %c0_60] : memref<9x8x8xbf16, #tpu.memory_space<vmem>>, vector<1x8x8xbf16>
    %44 = vector.shape_cast %43 : vector<1x8x8xbf16> to vector<8x8xbf16>
    %cst_61 = arith.constant dense<0.000000e+00> : vector<8x128xf32>
    %45 = tpu.matmul %44, %42, %cst_61 {dimension_numbers = #tpu.dot_dimension_numbers<[1], [0], [0], [1], [0, 0, 1, 1], [], []>} : vector<8x8xbf16>, vector<8x128xbf16>, vector<8x128xf32> -> vector<8x128xf32>
    %46 = arith.addf %40, %45 : vector<8x128xf32>
    %c0_62 = arith.constant 0 : index
    %c0_63 = arith.constant 0 : index
    %c0_64 = arith.constant 0 : index
    %c0_65 = arith.constant 0 : index
    %c10 = arith.constant 10 : index
    %47 = vector.load %arg3[%c0_62, %c0_63, %c0_64, %c0_65, %c10] : memref<1x1x4x8x256xbf16, #tpu.memory_space<vmem>>, vector<1x1x1x8x128xbf16>
    %48 = vector.shape_cast %47 : vector<1x1x1x8x128xbf16> to vector<8x128xbf16>
    %c8 = arith.constant 8 : index
    %c0_66 = arith.constant 0 : index
    %c0_67 = arith.constant 0 : index
    %49 = vector.load %arg2[%c8, %c0_66, %c0_67] : memref<9x8x8xbf16, #tpu.memory_space<vmem>>, vector<1x8x8xbf16>
    %50 = vector.shape_cast %49 : vector<1x8x8xbf16> to vector<8x8xbf16>
    %cst_68 = arith.constant dense<0.000000e+00> : vector<8x128xf32>
    %51 = tpu.matmul %50, %48, %cst_68 {dimension_numbers = #tpu.dot_dimension_numbers<[1], [0], [0], [1], [0, 0, 1, 1], [], []>} : vector<8x8xbf16>, vector<8x128xbf16>, vector<8x128xf32> -> vector<8x128xf32>
    %52 = arith.addf %46, %51 : vector<8x128xf32>
    %c0_69 = arith.constant 0 : index
    %c0_70 = arith.constant 0 : index
    %53 = vector.load %arg4[%c0_69, %c0_70] : memref<8x1xf32, #tpu.memory_space<vmem>>, vector<8x1xf32>
    %54 = vector.broadcast %53 : vector<8x1xf32> to vector<8x128xf32>
    %55 = arith.mulf %52, %54 : vector<8x128xf32>
    %c0_71 = arith.constant 0 : index
    %c0_72 = arith.constant 0 : index
    %56 = vector.load %arg5[%c0_71, %c0_72] : memref<8x1xf32, #tpu.memory_space<vmem>>, vector<8x1xf32>
    %57 = vector.broadcast %56 : vector<8x1xf32> to vector<8x128xf32>
    %58 = arith.addf %55, %57 : vector<8x128xf32>
    %cst_73 = arith.constant 0.000000e+00 : f32
    %59 = vector.broadcast %cst_73 : f32 to vector<8x128xf32>
    %60 = arith.maximumf %58, %59 : vector<8x128xf32>
    %c0_74 = arith.constant 0 : index
    %c0_75 = arith.constant 0 : index
    %c0_76 = arith.constant 0 : index
    %61 = vector.load %arg6[%c0_74, %c0_75, %c0_76] : memref<1x8x128xf32, #tpu.memory_space<vmem>>, vector<1x8x128xf32>
    %62 = vector.shape_cast %61 : vector<1x8x128xf32> to vector<8x128xf32>
    %63 = vector.shape_cast %60 : vector<8x128xf32> to vector<1x8x128xf32>
    tpu.vector_store %arg6[%c0_74, %c0_75, %c0_76], %63 {strides = array<i32>} : memref<1x8x128xf32, #tpu.memory_space<vmem>>, vector<1x8x128xf32>,
    return
  }
  func.func @transform_0(%arg0: i32, %arg1: i32) -> (i32, i32, i32) {
    %c0_i32 = arith.constant 0 : i32
    %c0_i32_0 = arith.constant 0 : i32
    %c0_i32_1 = arith.constant 0 : i32
    %c0_i32_2 = arith.constant 0 : i32
    return %c0_i32, %c0_i32_0, %c0_i32_1 : i32, i32, i32
  }
  func.func @transform_1(%arg0: i32, %arg1: i32) -> (i32, i32, i32, i32, i32) {
    %c0_i32 = arith.constant 0 : i32
    %c0_i32_0 = arith.constant 0 : i32
    %c0_i32_1 = arith.constant 0 : i32
    %c0_i32_2 = arith.constant 0 : i32
    return %arg0, %arg1, %c0_i32, %c0_i32_0, %c0_i32_1 : i32, i32, i32, i32, i32
  }
  func.func @transform_2(%arg0: i32, %arg1: i32) -> (i32, i32) {
    %c0_i32 = arith.constant 0 : i32
    %c0_i32_0 = arith.constant 0 : i32
    %c0_i32_1 = arith.constant 0 : i32
    return %c0_i32, %c0_i32_0 : i32, i32
  }
  func.func @transform_3(%arg0: i32, %arg1: i32) -> (i32, i32) {
    %c0_i32 = arith.constant 0 : i32
    %c0_i32_0 = arith.constant 0 : i32
    %c0_i32_1 = arith.constant 0 : i32
    return %c0_i32, %c0_i32_0 : i32, i32
  }
  func.func @transform_4(%arg0: i32, %arg1: i32) -> (i32, i32, i32) {
    %c0_i32 = arith.constant 0 : i32
    %c0_i32_0 = arith.constant 0 : i32
    return %arg0, %c0_i32, %arg1 : i32, i32, i32
  }
}

</mosaic_0001>

<llo_original>
// kernel: downsample_module_forward.1
$region0: #{downsample_module_forward.1}
  #allocation0 [shape = 'u32[]', space=smem, size = 0x4, offset = 0x4, fixed_abs, tag = 'smem constant byte address 0x4 - core index']
  #allocation1 [shape = 'u32[144,128]{1,0:T(1,128)}', space=vmem, size = 0x12000, scoped, tag = 'internal scratch']
  %s0 = inlined_call_operand.vmem [shape: bf16[9,8,8], index: 0, kind: input, shape index: {}]
  %s1 = inlined_call_operand.vmem [shape: bf16[2,1,4,8,256], index: 1, kind: input, shape index: {}]
  %s2 = inlined_call_operand.vmem [shape: f32[8,1], index: 2, kind: input, shape index: {}]
  %s3 = inlined_call_operand.vmem [shape: f32[8,1], index: 3, kind: input, shape index: {}]
  %s4 = inlined_call_operand.vmem [shape: f32[2,8,128], index: 4, kind: output, shape index: {}]
  %s5 = sld [smem:[#allocation0]]
  $region49: #{downsample_module_forward.1} parent=0
    _
  %s7 = ssub.s32 1, %s5
  %s8 = scalar_select 0, %s7, %s5
  loop: start=0, step=1, limit=4
  $region2: #{downsample_module_forward.1} parent=0 // loop_pre_header
    _
  $region3: #{downsample_module_forward.1} parent=0 // loop_header
    %s10 = sphi 0, %s14
    %p11 = scmp.ge.s32.totalorder %s10, 4
    %s17 = sphi 0, %s29
    %s18 = sphi 0, %s25
    %s19 = sphi 0, %s17
    %s20 = sphi 0, %s18
    %s21 = sphi 0, %s19
    %s22 = sphi 0, %s20
    %s30 = sphi 0, %s30
    %s32 = sphi 0, %s30
    %s33 = sphi 0, %s32
    %s47 = sphi 0, %s33
    %s55 = sphi 0, %s57
    %s58 = sphi 0, %s55
    %s59 = sphi 0, %s58
    %s75 = sphi 0, %s59
    %s79 = sphi 0, %s79
    %s81 = sphi 0, %s79
    %s82 = sphi 0, %s81
    %s96 = sphi 0, %s82
    %s100 = sphi 0, %s100
    %s102 = sphi 0, %s100
    %s103 = sphi 0, %s102
    %s117 = sphi 0, %s103
    %s125 = sphi 0, %s127
    %s128 = sphi 0, %s125
    %s129 = sphi 0, %s128
    %s145 = sphi 0, %s129
  $region4: #{downsample_module_forward.1} parent=0 // loop_header_branch
    %13 = sbr.rel (%p11) target = $region8
  $region5: #{downsample_module_forward.1} parent=0 // loop_body
    %s15 = ssub.s32 %s10, 1
    %s16 = ssub.s32 %s10, 2
    %s23 = sadd.s32 1, %s18
    %p24 = scmp.ge.s32.totalorder %s23, 1
    %s25 = scalar_select %p24, 0, %s23
    %s26 = sadd.s32 1, %s17
    %s27 = scalar_select %p24, %s26, %s17
    %p28 = scmp.ge.s32.totalorder %s27, 2
    %s29 = scalar_select %p28, 0, %s27
    %s31 = sadd.s32 %s30, 1
    %p34 = scmp.eq.s32.totalorder %s10, 1
    %p35 = scmp.ne.s32.totalorder %s30, %s32
    %p36 = scmp.eq.s32.totalorder %s10, 0
    %p37 = por %p35, %p36
    %p38 = scmp.ne.s32.totalorder %s30, %s32
    %p39 = scmp.eq.s32.totalorder %s15, 1
    %p40 = por %p38, %p39
    %p41 = scmp.ne.s32.totalorder %s32, %s33
    %p42 = scmp.eq.s32.totalorder %s15, 0
    %p43 = por %p41, %p42
    %p44 = scmp.ne.s32.totalorder %s32, %s33
    %p45 = scmp.eq.s32.totalorder %s16, 1
    %p46 = por %p44, %p45
    %p48 = scmp.ne.s32.totalorder %s33, %s47
    %p49 = scmp.eq.s32.totalorder %s16, 0
    %p50 = por %p48, %p49
    %s51 = ssub.s32 %s17, %s29
    %s52 = ssub.s32 %s18, %s25
    %s53 = sor.u32 %s51, %s52
    %p54 = scmp.eq.s32.totalorder %s53, 0
    %s56 = sadd.s32 %s55, 1
    %s57 = scalar_select %p54, %s55, %s56
    %p60 = pneg %p54
    %p61 = scmp.eq.s32.totalorder %s10, 1
    %p62 = por %p60, %p61
    %p63 = scmp.ne.s32.totalorder %s55, %s58
    %p64 = scmp.eq.s32.totalorder %s10, 0
    %p65 = por %p63, %p64
    %p66 = scmp.ne.s32.totalorder %s55, %s58
    %p67 = scmp.eq.s32.totalorder %s15, 1
    %p68 = por %p66, %p67
    %p69 = scmp.ne.s32.totalorder %s58, %s59
    %p70 = scmp.eq.s32.totalorder %s15, 0
    %p71 = por %p69, %p70
    %p72 = scmp.ne.s32.totalorder %s58, %s59
    %p73 = scmp.eq.s32.totalorder %s16, 1
    %p74 = por %p72, %p73
    %p76 = scmp.ne.s32.totalorder %s59, %s75
    %p77 = scmp.eq.s32.totalorder %s16, 0
    %p78 = por %p76, %p77
    %s80 = sadd.s32 %s79, 1
    %p83 = scmp.eq.s32.totalorder %s10, 1
    %p84 = scmp.ne.s32.totalorder %s79, %s81
    %p85 = scmp.eq.s32.totalorder %s10, 0
    %p86 = por %p84, %p85
    %p87 = scmp.ne.s32.totalorder %s79, %s81
    %p88 = scmp.eq.s32.totalorder %s15, 1
    %p89 = por %p87, %p88
    %p90 = scmp.ne.s32.totalorder %s81, %s82
    %p91 = scmp.eq.s32.totalorder %s15, 0
    %p92 = por %p90, %p91
    %p93 = scmp.ne.s32.totalorder %s81, %s82
    %p94 = scmp.eq.s32.totalorder %s16, 1
    %p95 = por %p93, %p94
    %p97 = scmp.ne.s32.totalorder %s82, %s96
    %p98 = scmp.eq.s32.totalorder %s16, 0
    %p99 = por %p97, %p98
    %s101 = sadd.s32 %s100, 1
    %p104 = scmp.eq.s32.totalorder %s10, 1
    %p105 = scmp.ne.s32.totalorder %s100, %s102
    %p106 = scmp.eq.s32.totalorder %s10, 0
    %p107 = por %p105, %p106
    %p108 = scmp.ne.s32.totalorder %s100, %s102
    %p109 = scmp.eq.s32.totalorder %s15, 1
    %p110 = por %p108, %p109
    %p111 = scmp.ne.s32.totalorder %s102, %s103
    %p112 = scmp.eq.s32.totalorder %s15, 0
    %p113 = por %p111, %p112
    %p114 = scmp.ne.s32.totalorder %s102, %s103
    %p115 = scmp.eq.s32.totalorder %s16, 1
    %p116 = por %p114, %p115
    %p118 = scmp.ne.s32.totalorder %s103, %s117
    %p119 = scmp.eq.s32.totalorder %s16, 0
    %p120 = por %p118, %p119
    %s121 = ssub.s32 %s17, %s29
    %s122 = ssub.s32 %s18, %s25
    %s123 = sor.u32 %s121, %s122
    %p124 = scmp.eq.s32.totalorder %s123, 0
    %s126 = sadd.s32 %s125, 1
    %s127 = scalar_select %p124, %s125, %s126
    %p130 = pneg %p124
    %p131 = scmp.eq.s32.totalorder %s10, 1
    %p132 = por %p130, %p131
    %p133 = scmp.ne.s32.totalorder %s125, %s128
    %p134 = scmp.eq.s32.totalorder %s10, 0
    %p135 = por %p133, %p134
    %p136 = scmp.ne.s32.totalorder %s125, %s128
    %p137 = scmp.eq.s32.totalorder %s15, 1
    %p138 = por %p136, %p137
    %p139 = scmp.ne.s32.totalorder %s128, %s129
    %p140 = scmp.eq.s32.totalorder %s15, 0
    %p141 = por %p139, %p140
    %p142 = scmp.ne.s32.totalorder %s128, %s129
    %p143 = scmp.eq.s32.totalorder %s16, 1
    %p144 = por %p142, %p143
    %p146 = scmp.ne.s32.totalorder %s129, %s145
    %p147 = scmp.eq.s32.totalorder %s16, 0
    %p148 = por %p146, %p147
    %p149 = scmp.le.s32.totalorder 1, %s10
    %p150 = scmp.lt.s32.totalorder %s10, 3
    %p151 = pnand %p149, %p150
    %p152 = pneg %p151
    // Predicated region
    $region9: #{downsample_module_forward.1} parent=5 // pred_check
      _
    $region10: #{downsample_module_forward.1} parent=5 // pred_check_branch
      %154 = sbr.rel (%p151) target = $region12
    $region11: #{downsample_module_forward.1} parent=5 // pred_region
      %s155 = ssub.s32 %s10, 1
      // Predicated region
      $region13: #{downsample_module_forward.1} parent=11 // pred_check
        %p156 = pneg %p43
      $region14: #{downsample_module_forward.1} parent=11 // pred_check_branch
        %158 = sbr.rel (%p156) target = $region16
      $region15: #{downsample_module_forward.1} parent=11 // pred_region
        _
      $region16: #{downsample_module_forward.1} parent=11 // pred_fallthru
        _
      // Predicated region
      $region17: #{downsample_module_forward.1} parent=11 // pred_check
        %p159 = pneg %p92
      $region18: #{downsample_module_forward.1} parent=11 // pred_check_branch
        %161 = sbr.rel (%p159) target = $region20
      $region19: #{downsample_module_forward.1} parent=11 // pred_region
        _
      $region20: #{downsample_module_forward.1} parent=11 // pred_fallthru
        _
      // Predicated region
      $region21: #{downsample_module_forward.1} parent=11 // pred_check
        %p162 = pneg %p113
      $region22: #{downsample_module_forward.1} parent=11 // pred_check_branch
        %164 = sbr.rel (%p162) target = $region24
      $region23: #{downsample_module_forward.1} parent=11 // pred_region
        _
      $region24: #{downsample_module_forward.1} parent=11 // pred_fallthru
        _
    $region12: #{downsample_module_forward.1} parent=5 // pred_fallthru
      _
    %p165 = scmp.lt.s32.totalorder %s10, 2
    // Predicated region
    $region25: #{downsample_module_forward.1} parent=5 // pred_check
      %p166 = pneg %p165
    $region26: #{downsample_module_forward.1} parent=5 // pred_check_branch
      %168 = sbr.rel (%p166) target = $region28
    $region27: #{downsample_module_forward.1} parent=5 // pred_region
      // Predicated region
      $region29: #{downsample_module_forward.1} parent=27 // pred_check
        %p169 = pneg %p65
      $region30: #{downsample_module_forward.1} parent=27 // pred_check_branch
        %171 = sbr.rel (%p169) target = $region32
      $region31: #{downsample_module_forward.1} parent=27 // pred_region
        %p172 = scmp.lt.s32.totalorder %s17, 1
        %s173 = scalar_select %p172, %s17, 1
        %p174 = scmp.lt.s32.totalorder %s18, 0
        %s175 = scalar_select %p174, %s18, 0
        %s176 = smul.addr %s175, 8
        %s177 = smul.addr %s173, 8
        %s178 = sadd.s32 %s176, %s177
        %s179 = smul.addr %s178, 4
        %s180 = scalar_lea.vmem %s1, %s179
      $region32: #{downsample_module_forward.1} parent=27 // pred_fallthru
        _
    $region28: #{downsample_module_forward.1} parent=5 // pred_fallthru
      _
    %p181 = scmp.le.s32.totalorder 1, %s10
    %p182 = scmp.lt.s32.totalorder %s10, 3
    %p183 = pnand %p181, %p182
    %p184 = pneg %p183
    // Predicated region
    $region33: #{downsample_module_forward.1} parent=5 // pred_check
      _
    $region34: #{downsample_module_forward.1} parent=5 // pred_check_branch
      %186 = sbr.rel (%p183) target = $region36
    $region35: #{downsample_module_forward.1} parent=5 // pred_region
      %s187 = ssub.s32 %s10, 1
      %p188 = pneg %p43
      %p189 = pneg %p40
      %p190 = scmp.lt.s32.totalorder %s19, 1
      %s191 = scalar_select %p190, %s19, 1
      %p192 = scmp.lt.s32.totalorder %s20, 0
      %s193 = scalar_select %p192, %s20, 0
      %s194 = smul.addr %s193, 8
      %s195 = smul.addr %s191, 8
      %s196 = sadd.s32 %s194, %s195
      %s197 = smul.addr %s196, 4
      %s198 = scalar_lea.vmem %s1, %s197
      %p199 = pneg %p71
      %p200 = pneg %p68
      %p201 = pneg %p92
      %p202 = pneg %p89
      %p203 = pneg %p113
      %p204 = pneg %p110
      %p205 = pneg %p141
      %p206 = pneg %p138
      %p207 = scmp.lt.s32.totalorder %s19, 1
      %s208 = scalar_select %p207, %s19, 1
      %p209 = scmp.lt.s32.totalorder %s20, 0
      %s210 = scalar_select %p209, %s20, 0
      %s211 = sadd.s32 %s210, %s208
      %s212 = smul.addr %s211, 8
      %s213 = scalar_lea.vmem %s4, %s212
      %p214 = scmp.lt.s32.totalorder %s19, 1
      %s215 = scalar_select %p214, %s19, 1
      %p216 = scmp.lt.s32.totalorder %s20, 0
      %s217 = scalar_select %p216, %s20, 0
      %s218 = smul.addr %s217, 8
      %s219 = smul.addr %s215, 8
      %s220 = sadd.s32 %s218, %s219
      %s221 = smul.addr %s220, 4
      %s222 = scalar_lea.vmem %s1, %s221
      %p223 = scmp.lt.s32.totalorder %s19, 1
      %s224 = scalar_select %p223, %s19, 1
      %p225 = scmp.lt.s32.totalorder %s20, 0
      %s226 = scalar_select %p225, %s20, 0
      %s227 = sadd.s32 %s226, %s224
      %s228 = smul.addr %s227, 8
      %s229 = scalar_lea.vmem %s4, %s228
      %v231 = vld [vmem:[%s222] sm:$0xf]
      %v232 = vld [vmem:[%s0] sm:$0xf]
      %s233 = scalar_lea.vmem %s222, 8
      %v234 = vld [vmem:[%s233] sm:$0xf]
      %s235 = scalar_lea.vmem %s0, 4
      %v236 = vld [vmem:[%s235] sm:$0xf]
      %vm237 = vcmask 64512
      %v239 = vsel %vm237, %v236, 0
      %vm241 = vcmask 1043456
      %v243 = vsel %vm241, %v234, 0
      %245 = vmatprep.subr.bf16.mxu0 0
      %246 = vmatpush1.bf16.msra.mxu0 %v243
      %247 = vmatprep.subr.bf16.mxu0 0
      %248 = vmatpush1.bf16.msra.mxu0 0
      %249 = vmatprep.subr.bf16.mxu0 0
      %250 = vmatpush1.bf16.msra.mxu0 0
      %251 = vmatprep.subr.bf16.mxu0 0
      %252 = vmatpush1.bf16.msra.mxu0 0
      %253 = vmatprep.subr.bf16.mxu0 0
      %254 = vmatpush1.bf16.msra.mxu0 0
      %255 = vmatprep.subr.bf16.mxu0 0
      %256 = vmatpush1.bf16.msra.mxu0 0
      %257 = vmatprep.subr.bf16.mxu0 0
      %258 = vmatpush1.bf16.msra.mxu0 0
      %259 = vmatprep.subr.bf16.mxu0 0
      %260 = vmatpush1.bf16.msra.mxu0 0
      %261 = vmatprep.subr.bf16.mxu0 0
      %262 = vmatpush1.bf16.msra.mxu0 0
      %263 = vmatprep.subr.bf16.mxu0 0
      %264 = vmatpush1.bf16.msra.mxu0 0
      %265 = vmatprep.subr.bf16.mxu0 0
      %266 = vmatpush1.bf16.msra.mxu0 0
      %267 = vmatprep.subr.bf16.mxu0 0
      %268 = vmatpush1.bf16.msra.mxu0 0
      %269 = vmatprep.subr.bf16.mxu0 0
      %270 = vmatpush1.bf16.msra.mxu0 0
      %271 = vmatprep.subr.bf16.mxu0 0
      %272 = vmatpush1.bf16.msra.mxu0 0
      %273 = vmatprep.subr.bf16.mxu0 0
      %274 = vmatpush1.bf16.msra.mxu0 0
      %275 = vmatprep.subr.bf16.mxu0 0
      %276 = vmatpush1.bf16.msra.mxu0 0
      %277 = vmatprep.mubr.bf16.mxu0 0
      %278 = vmatmul.mubr.bf16.gmra.mrb[0].mxu0 %v239
      %v279 = vpop.f32.mrb[0].mxu0
      %v280 = vadd.f32 0.0, %v279
      %v281 = vpop.f32.mrb[0].mxu0
      %v282 = vpop.f32.mrb[0].mxu0
      %v283 = vpop.f32.mrb[0].mxu0
      %284 = vdwg.mxu0
      %v286 = vsel %vm237, %v232, 0
      %v289 = vsel %vm241, %v231, 0
      %291 = vmatprep.subr.bf16.mxu0 0
      %292 = vmatpush1.bf16.msra.mxu0 %v289
      %293 = vmatprep.subr.bf16.mxu0 0
      %294 = vmatpush1.bf16.msra.mxu0 0
      %295 = vmatprep.subr.bf16.mxu0 0
      %296 = vmatpush1.bf16.msra.mxu0 0
      %297 = vmatprep.subr.bf16.mxu0 0
      %298 = vmatpush1.bf16.msra.mxu0 0
      %299 = vmatprep.subr.bf16.mxu0 0
      %300 = vmatpush1.bf16.msra.mxu0 0
      %301 = vmatprep.subr.bf16.mxu0 0
      %302 = vmatpush1.bf16.msra.mxu0 0
      %303 = vmatprep.subr.bf16.mxu0 0
      %304 = vmatpush1.bf16.msra.mxu0 0
      %305 = vmatprep.subr.bf16.mxu0 0
      %306 = vmatpush1.bf16.msra.mxu0 0
      %307 = vmatprep.subr.bf16.mxu0 0
      %308 = vmatpush1.bf16.msra.mxu0 0
      %309 = vmatprep.subr.bf16.mxu0 0
      %310 = vmatpush1.bf16.msra.mxu0 0
      %311 = vmatprep.subr.bf16.mxu0 0
      %312 = vmatpush1.bf16.msra.mxu0 0
      %313 = vmatprep.subr.bf16.mxu0 0
      %314 = vmatpush1.bf16.msra.mxu0 0
      %315 = vmatprep.subr.bf16.mxu0 0
      %316 = vmatpush1.bf16.msra.mxu0 0
      %317 = vmatprep.subr.bf16.mxu0 0
      %318 = vmatpush1.bf16.msra.mxu0 0
      %319 = vmatprep.subr.bf16.mxu0 0
      %320 = vmatpush1.bf16.msra.mxu0 0
      %321 = vmatprep.subr.bf16.mxu0 0
      %322 = vmatpush1.bf16.msra.mxu0 0
      %323 = vmatprep.mubr.bf16.mxu0 0
      %324 = vmatmul.mubr.bf16.gmra.mrb[0].mxu0 %v286
      %v325 = vpop.f32.mrb[0].mxu0
      %v326 = vadd.f32 %v280, %v325
      %v327 = vpop.f32.mrb[0].mxu0
      %v328 = vpop.f32.mrb[0].mxu0
      %v329 = vpop.f32.mrb[0].mxu0
      %330 = vdwg.mxu0
      %v331 = vld [vmem:[%s222] sm:$0xff]
      %s332 = scalar_lea.vmem %s0, 8
      %v333 = vld [vmem:[%s332] sm:$0xf]
      %v335 = vunpack.c.l.b16 %v331
      %v336 = vunpack.c.h.b16 %v331
      %v337 = vpack.c.b16 %v335, %v335
      %v338 = vpack.c.b16 %v336, %v336
      %339 = vrot.lane.b32.xlu0 %v337, 127
      %v340 = vpop.permute.xlu0 %339
      %341 = vrot.lane.b32.xlu0 %v338, 127
      %v342 = vpop.permute.xlu0 %341
      %vm343 = vcmask 1039360
      %v344 = vsel %vm343, %v340, %v342
      %v346 = vsel %vm237, %v333, 0
      %v349 = vsel %vm241, %v344, 0
      %351 = vmatprep.subr.bf16.mxu0 0
      %352 = vmatpush1.bf16.msra.mxu0 %v349
      %353 = vmatprep.subr.bf16.mxu0 0
      %354 = vmatpush1.bf16.msra.mxu0 0
      %355 = vmatprep.subr.bf16.mxu0 0
      %356 = vmatpush1.bf16.msra.mxu0 0
      %357 = vmatprep.subr.bf16.mxu0 0
      %358 = vmatpush1.bf16.msra.mxu0 0
      %359 = vmatprep.subr.bf16.mxu0 0
      %360 = vmatpush1.bf16.msra.mxu0 0
      %361 = vmatprep.subr.bf16.mxu0 0
      %362 = vmatpush1.bf16.msra.mxu0 0
      %363 = vmatprep.subr.bf16.mxu0 0
      %364 = vmatpush1.bf16.msra.mxu0 0
      %365 = vmatprep.subr.bf16.mxu0 0
      %366 = vmatpush1.bf16.msra.mxu0 0
      %367 = vmatprep.subr.bf16.mxu0 0
      %368 = vmatpush1.bf16.msra.mxu0 0
      %369 = vmatprep.subr.bf16.mxu0 0
      %370 = vmatpush1.bf16.msra.mxu0 0
      %371 = vmatprep.subr.bf16.mxu0 0
      %372 = vmatpush1.bf16.msra.mxu0 0
      %373 = vmatprep.subr.bf16.mxu0 0
      %374 = vmatpush1.bf16.msra.mxu0 0
      %375 = vmatprep.subr.bf16.mxu0 0
      %376 = vmatpush1.bf16.msra.mxu0 0
      %377 = vmatprep.subr.bf16.mxu0 0
      %378 = vmatpush1.bf16.msra.mxu0 0
      %379 = vmatprep.subr.bf16.mxu0 0
      %380 = vmatpush1.bf16.msra.mxu0 0
      %381 = vmatprep.subr.bf16.mxu0 0
      %382 = vmatpush1.bf16.msra.mxu0 0
      %383 = vmatprep.mubr.bf16.mxu0 0
      %384 = vmatmul.mubr.bf16.gmra.mrb[0].mxu0 %v346
      %v385 = vpop.f32.mrb[0].mxu0
      %v386 = vadd.f32 0.0, %v385
      %v387 = vpop.f32.mrb[0].mxu0
      %v388 = vpop.f32.mrb[0].mxu0
      %v389 = vpop.f32.mrb[0].mxu0
      %390 = vdwg.mxu0
      %v391 = vadd.f32 %v326, %v386
      %s392 = scalar_lea.vmem %s222, 16
      %v393 = vld [vmem:[%s392] sm:$0xf]
      %s394 = scalar_lea.vmem %s0, 12
      %v395 = vld [vmem:[%s394] sm:$0xf]
      %v397 = vsel %vm237, %v395, 0
      %v400 = vsel %vm241, %v393, 0
      %402 = vmatprep.subr.bf16.mxu0 0
      %403 = vmatpush1.bf16.msra.mxu0 %v400
      %404 = vmatprep.subr.bf16.mxu0 0
      %405 = vmatpush1.bf16.msra.mxu0 0
      %406 = vmatprep.subr.bf16.mxu0 0
      %407 = vmatpush1.bf16.msra.mxu0 0
      %408 = vmatprep.subr.bf16.mxu0 0
      %409 = vmatpush1.bf16.msra.mxu0 0
      %410 = vmatprep.subr.bf16.mxu0 0
      %411 = vmatpush1.bf16.msra.mxu0 0
      %412 = vmatprep.subr.bf16.mxu0 0
      %413 = vmatpush1.bf16.msra.mxu0 0
      %414 = vmatprep.subr.bf16.mxu0 0
      %415 = vmatpush1.bf16.msra.mxu0 0
      %416 = vmatprep.subr.bf16.mxu0 0
      %417 = vmatpush1.bf16.msra.mxu0 0
      %418 = vmatprep.subr.bf16.mxu0 0
      %419 = vmatpush1.bf16.msra.mxu0 0
      %420 = vmatprep.subr.bf16.mxu0 0
      %421 = vmatpush1.bf16.msra.mxu0 0
      %422 = vmatprep.subr.bf16.mxu0 0
      %423 = vmatpush1.bf16.msra.mxu0 0
      %424 = vmatprep.subr.bf16.mxu0 0
      %425 = vmatpush1.bf16.msra.mxu0 0
      %426 = vmatprep.subr.bf16.mxu0 0
      %427 = vmatpush1.bf16.msra.mxu0 0
      %428 = vmatprep.subr.bf16.mxu0 0
      %429 = vmatpush1.bf16.msra.mxu0 0
      %430 = vmatprep.subr.bf16.mxu0 0
      %431 = vmatpush1.bf16.msra.mxu0 0
      %432 = vmatprep.subr.bf16.mxu0 0
      %433 = vmatpush1.bf16.msra.mxu0 0
      %434 = vmatprep.mubr.bf16.mxu0 0
      %435 = vmatmul.mubr.bf16.gmra.mrb[0].mxu0 %v397
      %v436 = vpop.f32.mrb[0].mxu0
      %v437 = vadd.f32 0.0, %v436
      %v438 = vpop.f32.mrb[0].mxu0
      %v439 = vpop.f32.mrb[0].mxu0
      %v440 = vpop.f32.mrb[0].mxu0
      %441 = vdwg.mxu0
      %v442 = vadd.f32 %v391, %v437
      %s443 = scalar_lea.vmem %s222, 24
      %v444 = vld [vmem:[%s443] sm:$0xf]
      %s445 = scalar_lea.vmem %s0, 16
      %v446 = vld [vmem:[%s445] sm:$0xf]
      %v448 = vsel %vm237, %v446, 0
      %v451 = vsel %vm241, %v444, 0
      %453 = vmatprep.subr.bf16.mxu0 0
      %454 = vmatpush1.bf16.msra.mxu0 %v451
      %455 = vmatprep.subr.bf16.mxu0 0
      %456 = vmatpush1.bf16.msra.mxu0 0
      %457 = vmatprep.subr.bf16.mxu0 0
      %458 = vmatpush1.bf16.msra.mxu0 0
      %459 = vmatprep.subr.bf16.mxu0 0
      %460 = vmatpush1.bf16.msra.mxu0 0
      %461 = vmatprep.subr.bf16.mxu0 0
      %462 = vmatpush1.bf16.msra.mxu0 0
      %463 = vmatprep.subr.bf16.mxu0 0
      %464 = vmatpush1.bf16.msra.mxu0 0
      %465 = vmatprep.subr.bf16.mxu0 0
      %466 = vmatpush1.bf16.msra.mxu0 0
      %467 = vmatprep.subr.bf16.mxu0 0
      %468 = vmatpush1.bf16.msra.mxu0 0
      %469 = vmatprep.subr.bf16.mxu0 0
      %470 = vmatpush1.bf16.msra.mxu0 0
      %471 = vmatprep.subr.bf16.mxu0 0
      %472 = vmatpush1.bf16.msra.mxu0 0
      %473 = vmatprep.subr.bf16.mxu0 0
      %474 = vmatpush1.bf16.msra.mxu0 0
      %475 = vmatprep.subr.bf16.mxu0 0
      %476 = vmatpush1.bf16.msra.mxu0 0
      %477 = vmatprep.subr.bf16.mxu0 0
      %478 = vmatpush1.bf16.msra.mxu0 0
      %479 = vmatprep.subr.bf16.mxu0 0
      %480 = vmatpush1.bf16.msra.mxu0 0
      %481 = vmatprep.subr.bf16.mxu0 0
      %482 = vmatpush1.bf16.msra.mxu0 0
      %483 = vmatprep.subr.bf16.mxu0 0
      %484 = vmatpush1.bf16.msra.mxu0 0
      %485 = vmatprep.mubr.bf16.mxu0 0
      %486 = vmatmul.mubr.bf16.gmra.mrb[0].mxu0 %v448
      %v487 = vpop.f32.mrb[0].mxu0
      %v488 = vadd.f32 0.0, %v487
      %v489 = vpop.f32.mrb[0].mxu0
      %v490 = vpop.f32.mrb[0].mxu0
      %v491 = vpop.f32.mrb[0].mxu0
      %492 = vdwg.mxu0
      %v493 = vadd.f32 %v442, %v488
      %v494 = vld [vmem:[%s392] sm:$0xff]
      %s495 = scalar_lea.vmem %s0, 20
      %v496 = vld [vmem:[%s495] sm:$0xf]
      %v498 = vunpack.c.l.b16 %v494
      %v499 = vunpack.c.h.b16 %v494
      %v500 = vpack.c.b16 %v498, %v498
      %v501 = vpack.c.b16 %v499, %v499
      %502 = vrot.lane.b32.xlu0 %v500, 127
      %v503 = vpop.permute.xlu0 %502
      %504 = vrot.lane.b32.xlu0 %v501, 127
      %v505 = vpop.permute.xlu0 %504
      %v506 = vsel %vm343, %v503, %v505
      %v508 = vsel %vm237, %v496, 0
      %v511 = vsel %vm241, %v506, 0
      %513 = vmatprep.subr.bf16.mxu0 0
      %514 = vmatpush1.bf16.msra.mxu0 %v511
      %515 = vmatprep.subr.bf16.mxu0 0
      %516 = vmatpush1.bf16.msra.mxu0 0
      %517 = vmatprep.subr.bf16.mxu0 0
      %518 = vmatpush1.bf16.msra.mxu0 0
      %519 = vmatprep.subr.bf16.mxu0 0
      %520 = vmatpush1.bf16.msra.mxu0 0
      %521 = vmatprep.subr.bf16.mxu0 0
      %522 = vmatpush1.bf16.msra.mxu0 0
      %523 = vmatprep.subr.bf16.mxu0 0
      %524 = vmatpush1.bf16.msra.mxu0 0
      %525 = vmatprep.subr.bf16.mxu0 0
      %526 = vmatpush1.bf16.msra.mxu0 0
      %527 = vmatprep.subr.bf16.mxu0 0
      %528 = vmatpush1.bf16.msra.mxu0 0
      %529 = vmatprep.subr.bf16.mxu0 0
      %530 = vmatpush1.bf16.msra.mxu0 0
      %531 = vmatprep.subr.bf16.mxu0 0
      %532 = vmatpush1.bf16.msra.mxu0 0
      %533 = vmatprep.subr.bf16.mxu0 0
      %534 = vmatpush1.bf16.msra.mxu0 0
      %535 = vmatprep.subr.bf16.mxu0 0
      %536 = vmatpush1.bf16.msra.mxu0 0
      %537 = vmatprep.subr.bf16.mxu0 0
      %538 = vmatpush1.bf16.msra.mxu0 0
      %539 = vmatprep.subr.bf16.mxu0 0
      %540 = vmatpush1.bf16.msra.mxu0 0
      %541 = vmatprep.subr.bf16.mxu0 0
      %542 = vmatpush1.bf16.msra.mxu0 0
      %543 = vmatprep.subr.bf16.mxu0 0
      %544 = vmatpush1.bf16.msra.mxu0 0
      %545 = vmatprep.mubr.bf16.mxu0 0
      %546 = vmatmul.mubr.bf16.gmra.mrb[0].mxu0 %v508
      %v547 = vpop.f32.mrb[0].mxu0
      %v548 = vadd.f32 0.0, %v547
      %v549 = vpop.f32.mrb[0].mxu0
      %v550 = vpop.f32.mrb[0].mxu0
      %v551 = vpop.f32.mrb[0].mxu0
      %552 = vdwg.mxu0
      %v553 = vadd.f32 %v493, %v548
      %s554 = scalar_lea.vmem %s0, 24
      %v555 = vld [vmem:[%s554] sm:$0xf]
      %556 = vrot.lane.b32.xlu0 %v337, 119
      %v557 = vpop.permute.xlu0 %556
      %558 = vrot.lane.b32.xlu0 %v338, 119
      %v559 = vpop.permute.xlu0 %558
      %vm560 = vcmask 973824
      %v561 = vsel %vm560, %v557, %v559
      %v563 = vsel %vm237, %v555, 0
      %v566 = vsel %vm241, %v561, 0
      %568 = vmatprep.subr.bf16.mxu0 0
      %569 = vmatpush1.bf16.msra.mxu0 %v566
      %570 = vmatprep.subr.bf16.mxu0 0
      %571 = vmatpush1.bf16.msra.mxu0 0
      %572 = vmatprep.subr.bf16.mxu0 0
      %573 = vmatpush1.bf16.msra.mxu0 0
      %574 = vmatprep.subr.bf16.mxu0 0
      %575 = vmatpush1.bf16.msra.mxu0 0
      %576 = vmatprep.subr.bf16.mxu0 0
      %577 = vmatpush1.bf16.msra.mxu0 0
      %578 = vmatprep.subr.bf16.mxu0 0
      %579 = vmatpush1.bf16.msra.mxu0 0
      %580 = vmatprep.subr.bf16.mxu0 0
      %581 = vmatpush1.bf16.msra.mxu0 0
      %582 = vmatprep.subr.bf16.mxu0 0
      %583 = vmatpush1.bf16.msra.mxu0 0
      %584 = vmatprep.subr.bf16.mxu0 0
      %585 = vmatpush1.bf16.msra.mxu0 0
      %586 = vmatprep.subr.bf16.mxu0 0
      %587 = vmatpush1.bf16.msra.mxu0 0
      %588 = vmatprep.subr.bf16.mxu0 0
      %589 = vmatpush1.bf16.msra.mxu0 0
      %590 = vmatprep.subr.bf16.mxu0 0
      %591 = vmatpush1.bf16.msra.mxu0 0
      %592 = vmatprep.subr.bf16.mxu0 0
      %593 = vmatpush1.bf16.msra.mxu0 0
      %594 = vmatprep.subr.bf16.mxu0 0
      %595 = vmatpush1.bf16.msra.mxu0 0
      %596 = vmatprep.subr.bf16.mxu0 0
      %597 = vmatpush1.bf16.msra.mxu0 0
      %598 = vmatprep.subr.bf16.mxu0 0
      %599 = vmatpush1.bf16.msra.mxu0 0
      %600 = vmatprep.mubr.bf16.mxu0 0
      %601 = vmatmul.mubr.bf16.gmra.mrb[0].mxu0 %v563
      %v602 = vpop.f32.mrb[0].mxu0
      %v603 = vadd.f32 0.0, %v602
      %v604 = vpop.f32.mrb[0].mxu0
      %v605 = vpop.f32.mrb[0].mxu0
      %v606 = vpop.f32.mrb[0].mxu0
      %607 = vdwg.mxu0
      %v608 = vadd.f32 %v553, %v603
      %v609 = vld [vmem:[%s233] sm:$0xff]
      %s610 = scalar_lea.vmem %s0, 28
      %v611 = vld [vmem:[%s610] sm:$0xf]
      %v613 = vunpack.c.l.b16 %v609
      %v614 = vunpack.c.h.b16 %v609
      %v615 = vpack.c.b16 %v613, %v613
      %v616 = vpack.c.b16 %v614, %v614
      %617 = vrot.lane.b32.xlu0 %v615, 119
      %v618 = vpop.permute.xlu0 %617
      %619 = vrot.lane.b32.xlu0 %v616, 119
      %v620 = vpop.permute.xlu0 %619
      %v621 = vsel %vm560, %v618, %v620
      %v623 = vsel %vm237, %v611, 0
      %v626 = vsel %vm241, %v621, 0
      %628 = vmatprep.subr.bf16.mxu0 0
      %629 = vmatpush1.bf16.msra.mxu0 %v626
      %630 = vmatprep.subr.bf16.mxu0 0
      %631 = vmatpush1.bf16.msra.mxu0 0
      %632 = vmatprep.subr.bf16.mxu0 0
      %633 = vmatpush1.bf16.msra.mxu0 0
      %634 = vmatprep.subr.bf16.mxu0 0
      %635 = vmatpush1.bf16.msra.mxu0 0
      %636 = vmatprep.subr.bf16.mxu0 0
      %637 = vmatpush1.bf16.msra.mxu0 0
      %638 = vmatprep.subr.bf16.mxu0 0
      %639 = vmatpush1.bf16.msra.mxu0 0
      %640 = vmatprep.subr.bf16.mxu0 0
      %641 = vmatpush1.bf16.msra.mxu0 0
      %642 = vmatprep.subr.bf16.mxu0 0
      %643 = vmatpush1.bf16.msra.mxu0 0
      %644 = vmatprep.subr.bf16.mxu0 0
      %645 = vmatpush1.bf16.msra.mxu0 0
      %646 = vmatprep.subr.bf16.mxu0 0
      %647 = vmatpush1.bf16.msra.mxu0 0
      %648 = vmatprep.subr.bf16.mxu0 0
      %649 = vmatpush1.bf16.msra.mxu0 0
      %650 = vmatprep.subr.bf16.mxu0 0
      %651 = vmatpush1.bf16.msra.mxu0 0
      %652 = vmatprep.subr.bf16.mxu0 0
      %653 = vmatpush1.bf16.msra.mxu0 0
      %654 = vmatprep.subr.bf16.mxu0 0
      %655 = vmatpush1.bf16.msra.mxu0 0
      %656 = vmatprep.subr.bf16.mxu0 0
      %657 = vmatpush1.bf16.msra.mxu0 0
      %658 = vmatprep.subr.bf16.mxu0 0
      %659 = vmatpush1.bf16.msra.mxu0 0
      %660 = vmatprep.mubr.bf16.mxu0 0
      %661 = vmatmul.mubr.bf16.gmra.mrb[0].mxu0 %v623
      %v662 = vpop.f32.mrb[0].mxu0
      %v663 = vadd.f32 0.0, %v662
      %v664 = vpop.f32.mrb[0].mxu0
      %v665 = vpop.f32.mrb[0].mxu0
      %v666 = vpop.f32.mrb[0].mxu0
      %667 = vdwg.mxu0
      %v668 = vadd.f32 %v608, %v663
      %s669 = scalar_lea.vmem %s0, 32
      %v670 = vld [vmem:[%s669] sm:$0xf]
      %671 = vrot.lane.b32.xlu0 %v337, 118
      %v672 = vpop.permute.xlu0 %671
      %673 = vrot.lane.b32.xlu0 %v338, 118
      %v674 = vpop.permute.xlu0 %673
      %vm675 = vcmask 965632
      %v676 = vsel %vm675, %v672, %v674
      %v678 = vsel %vm237, %v670, 0
      %v681 = vsel %vm241, %v676, 0
      %683 = vmatprep.subr.bf16.mxu0 0
      %684 = vmatpush1.bf16.msra.mxu0 %v681
      %685 = vmatprep.subr.bf16.mxu0 0
      %686 = vmatpush1.bf16.msra.mxu0 0
      %687 = vmatprep.subr.bf16.mxu0 0
      %688 = vmatpush1.bf16.msra.mxu0 0
      %689 = vmatprep.subr.bf16.mxu0 0
      %690 = vmatpush1.bf16.msra.mxu0 0
      %691 = vmatprep.subr.bf16.mxu0 0
      %692 = vmatpush1.bf16.msra.mxu0 0
      %693 = vmatprep.subr.bf16.mxu0 0
      %694 = vmatpush1.bf16.msra.mxu0 0
      %695 = vmatprep.subr.bf16.mxu0 0
      %696 = vmatpush1.bf16.msra.mxu0 0
      %697 = vmatprep.subr.bf16.mxu0 0
      %698 = vmatpush1.bf16.msra.mxu0 0
      %699 = vmatprep.subr.bf16.mxu0 0
      %700 = vmatpush1.bf16.msra.mxu0 0
      %701 = vmatprep.subr.bf16.mxu0 0
      %702 = vmatpush1.bf16.msra.mxu0 0
      %703 = vmatprep.subr.bf16.mxu0 0
      %704 = vmatpush1.bf16.msra.mxu0 0
      %705 = vmatprep.subr.bf16.mxu0 0
      %706 = vmatpush1.bf16.msra.mxu0 0
      %707 = vmatprep.subr.bf16.mxu0 0
      %708 = vmatpush1.bf16.msra.mxu0 0
      %709 = vmatprep.subr.bf16.mxu0 0
      %710 = vmatpush1.bf16.msra.mxu0 0
      %711 = vmatprep.subr.bf16.mxu0 0
      %712 = vmatpush1.bf16.msra.mxu0 0
      %713 = vmatprep.subr.bf16.mxu0 0
      %714 = vmatpush1.bf16.msra.mxu0 0
      %715 = vmatprep.mubr.bf16.mxu0 0
      %716 = vmatmul.mubr.bf16.gmra.mrb[0].mxu0 %v678
      %v717 = vpop.f32.mrb[0].mxu0
      %v718 = vadd.f32 0.0, %v717
      %v719 = vpop.f32.mrb[0].mxu0
      %v720 = vpop.f32.mrb[0].mxu0
      %v721 = vpop.f32.mrb[0].mxu0
      %722 = vdwg.mxu0
      %v723 = vadd.f32 %v668, %v718
      %v724 = vld [vmem:[%s2] sm:$0xff]
      %726 = vset.pattern.permute.xlu0 0
      %727 = vperm.xlu0 %726, %v724
      %v728 = vpop.permute.xlu0 %727
      %v730 = vmul.f32 %v723, %v728
      %v731 = vld [vmem:[%s3] sm:$0xff]
      %733 = vset.pattern.permute.xlu0 0
      %734 = vperm.xlu0 %733, %v731
      %v735 = vpop.permute.xlu0 %734
      %v737 = vadd.f32 %v730, %v735
      %v738 = vmax.f32 %v737, 0.0
      %739 = vst [vmem:[%s229] sm:$0xff] %v738
      %p740 = scmp.lt.s32.totalorder %s19, 1
      %s741 = scalar_select %p740, %s19, 1
      %p742 = scmp.lt.s32.totalorder %s20, 0
      %s743 = scalar_select %p742, %s20, 0
      %s744 = sadd.s32 %s743, %s741
      %s745 = smul.addr %s744, 8
      %s746 = scalar_lea.vmem %s4, %s745
      // Predicated region
      $region37: #{downsample_module_forward.1} parent=35 // pred_check
        %p747 = pneg %p138
      $region38: #{downsample_module_forward.1} parent=35 // pred_check_branch
        %749 = sbr.rel (%p747) target = $region40
      $region39: #{downsample_module_forward.1} parent=35 // pred_region
        _
      $region40: #{downsample_module_forward.1} parent=35 // pred_fallthru
        _
    $region36: #{downsample_module_forward.1} parent=5 // pred_fallthru
      _
    %p750 = scmp.le.s32.totalorder 2, %s10
    // Predicated region
    $region41: #{downsample_module_forward.1} parent=5 // pred_check
      %p751 = pneg %p750
    $region42: #{downsample_module_forward.1} parent=5 // pred_check_branch
      %753 = sbr.rel (%p751) target = $region44
    $region43: #{downsample_module_forward.1} parent=5 // pred_region
      %s754 = ssub.s32 %s10, 2
      // Predicated region
      $region45: #{downsample_module_forward.1} parent=43 // pred_check
        %p755 = pneg %p144
      $region46: #{downsample_module_forward.1} parent=43 // pred_check_branch
        %757 = sbr.rel (%p755) target = $region48
      $region47: #{downsample_module_forward.1} parent=43 // pred_region
        %p758 = scmp.lt.s32.totalorder %s21, 1
        %s759 = scalar_select %p758, %s21, 1
        %p760 = scmp.lt.s32.totalorder %s22, 0
        %s761 = scalar_select %p760, %s22, 0
        %s762 = sadd.s32 %s761, %s759
        %s763 = smul.addr %s762, 8
        %s764 = scalar_lea.vmem %s4, %s763
      $region48: #{downsample_module_forward.1} parent=43 // pred_fallthru
        _
    $region44: #{downsample_module_forward.1} parent=5 // pred_fallthru
      _
  $region6: #{downsample_module_forward.1} parent=0 // loop_footer
    %s14 = sadd.s32 1, %s10
  $region7: #{downsample_module_forward.1} parent=0 // loop_footer_branch
    %9 = sbr.rel target = $region3
  $region8: #{downsample_module_forward.1} parent=0 // loop_exit
    _

</llo_original>
